<compile_context>
chip_gen: v6e
topology: v6e:2x2x1
jax: 0.10.0
libtpu: 0.0.40
codegen_flags: <defaults>
</compile_context>

<pallas_src>
import jax
import jax.numpy as jnp
from jax.experimental import pallas as pl
from jax.experimental.pallas import tpu as pltpu


def _round_up(a, b):
    return ((a + b - 1) // b) * b


def _mlp_head_kernel(x_ref, w1_ref, b1_ref, w2_ref, b2_ref, w3_ref, b3_ref, o_ref):
    # Layer 1: bf16 matmul on the MXU, f32 accumulate, bias + ReLU in f32.
    h = jnp.dot(x_ref[...], w1_ref[...], preferred_element_type=jnp.float32)
    h = jnp.maximum(h + b1_ref[...], 0.0)
    # Layer 2: same.
    h = jnp.dot(h.astype(w2_ref.dtype), w2_ref[...], preferred_element_type=jnp.float32)
    h = jnp.maximum(h + b2_ref[...], 0.0)
    # Layer 3 (final): linear, no activation. Output columns are lane-padded to 128.
    y = jnp.dot(h.astype(w3_ref.dtype), w3_ref[...], preferred_element_type=jnp.float32)
    o_ref[...] = (y + b3_ref[...]).astype(o_ref.dtype)


def mlp_prediction_head(x, params, *, tm=None, compute_dtype=jnp.bfloat16):
    """x: (batch, num_queries, input_dim) -> (batch, num_queries, output_dim)."""
    (w1, b1), (w2, b2), (w3, b3) = params
    B, Q, Cin = x.shape
    H = w1.shape[1]
    Cout = w3.shape[1]
    M = B * Q

    # Row tile: as big as reasonable (capped at 512 to bound VMEM/vreg pressure on
    # the (tm, H) intermediates), and aim for >= 2 grid steps so v7x's two
    # TensorCores both get rows. Rounded to 16 for bf16 sublane packing.
    if tm is None:
        tm = max(16, min(512, _round_up(pl.cdiv(M, 2), 16)))
    grid = pl.cdiv(M, tm)
    M_pad = grid * tm

    # Lane-dense output: pad Cout to a multiple of 128 with zero columns of W3/b3.
    Cout_pad = _round_up(Cout, 128)

    x2d = x.reshape(M, Cin).astype(compute_dtype)
    if M_pad != M:
        x2d = jnp.pad(x2d, ((0, M_pad - M), (0, 0)))

    w1c = w1.astype(compute_dtype)
    w2c = w2.astype(compute_dtype)
    w3c = jnp.pad(w3, ((0, 0), (0, Cout_pad - Cout))).astype(compute_dtype)
    b1r = b1.reshape(1, H).astype(jnp.float32)
    b2r = b2.reshape(1, H).astype(jnp.float32)
    b3r = jnp.pad(b3, (0, Cout_pad - Cout)).reshape(1, Cout_pad).astype(jnp.float32)

    full = lambda i: (0, 0)  # weights/biases: constant block index -> stay resident

    out2d = pl.pallas_call(
        _mlp_head_kernel,
        out_shape=jax.ShapeDtypeStruct((M_pad, Cout_pad), x.dtype),
        grid_spec=pltpu.PrefetchScalarGridSpec(
            num_scalar_prefetch=0,
            grid=(grid,),
            in_specs=[
                pl.BlockSpec((tm, Cin), lambda i: (i, 0)),   # x row-tile (bf16)
                pl.BlockSpec((Cin, H), full),                # W1 (bf16)
                pl.BlockSpec((1, H), full),                  # b1 (f32)
                pl.BlockSpec((H, H), full),                  # W2 (bf16)
                pl.BlockSpec((1, H), full),                  # b2 (f32)
                pl.BlockSpec((H, Cout_pad), full),           # W3 (bf16, lane-padded)
                pl.BlockSpec((1, Cout_pad), full),           # b3 (f32, lane-padded)
            ],
            out_specs=pl.BlockSpec((tm, Cout_pad), lambda i: (i, 0)),
        ),
        compiler_params=pltpu.CompilerParams(
            dimension_semantics=("parallel",),
            vmem_limit_bytes=32 * 1024 * 1024,
        ),
    )(x2d, w1c, b1r, w2c, b2r, w3c, b3r)

    return out2d[:M, :Cout].reshape(B, Q, Cout)


def init_params(key, input_dim, hidden_dim, output_dim, num_layers, dtype=jnp.float32):
    """Deterministic nn.Linear-style init; weights stored as (in, out)."""
    dims = [input_dim] + [hidden_dim] * (num_layers - 1) + [output_dim]
    params = []
    for n_in, n_out in zip(dims[:-1], dims[1:]):
        key, kw, kb = jax.random.split(key, 3)
        bound = 1.0 / jnp.sqrt(n_in)
        w = jax.random.uniform(kw, (n_in, n_out), dtype, -bound, bound)
        b = jax.random.uniform(kb, (n_out,), dtype, -bound, bound)
        params.append((w, b))
    return params


def mlp_reference(x, params):
    """Pure-JAX f32 reference mirroring the PyTorch forward."""
    num_layers = len(params)
    for i, (w, b) in enumerate(params):
        x = x @ w + b
        if i < num_layers - 1:
            x = jnp.maximum(x, 0.0)
    return x


if __name__ == "__main__":
    # DETR-like but small: batch=2, num_queries=75 (exercises the ragged-M path),
    # input_dim=hidden_dim=32, output_dim=4 (box cx, cy, w, h), num_layers=3.
    B, Q, Cin, H, Cout, L = 2, 75, 32, 32, 4, 3

    key = jax.random.PRNGKey(0)
    kx, kp = jax.random.split(key)
    x = jax.random.normal(kx, (B, Q, Cin), jnp.float32)
    params = init_params(kp, Cin, H, Cout, L)

    out = mlp_prediction_head(x, params)
    out = jax.block_until_ready(out)

    ref = mlp_reference(x, params)
    assert out.shape == (B, Q, Cout), out.shape
    # bf16 MXU inputs with f32 accumulation -> loosened tolerance vs the pure-f32 reference.
    max_err = float(jnp.max(jnp.abs(out - ref)))
    assert jnp.allclose(out, ref, atol=5e-2, rtol=5e-2), f"mismatch vs reference, max_err={max_err}"

    print("KERNEL_OK")
</pallas_src>

<mosaic_0001>
module attributes {stable_mosaic.version = 11 : i64} {
  func.func @_mlp_head_kernel(%arg0: i32, %arg1: memref<80x32xbf16, #tpu.memory_space<vmem>>, %arg2: memref<32x32xbf16, #tpu.memory_space<vmem>>, %arg3: memref<1x32xf32, #tpu.memory_space<vmem>>, %arg4: memref<32x32xbf16, #tpu.memory_space<vmem>>, %arg5: memref<1x32xf32, #tpu.memory_space<vmem>>, %arg6: memref<32x128xbf16, #tpu.memory_space<vmem>>, %arg7: memref<1x128xf32, #tpu.memory_space<vmem>>, %arg8: memref<80x128xf32, #tpu.memory_space<vmem>>) attributes {dimension_semantics = [#tpu.dimension_semantics<parallel>], iteration_bounds = array<i64: 2>, scalar_prefetch = 0 : i64, scratch_operands = 0 : i64, tpu.core_type = #tpu.core_type<tc>, window_params = [{transform_indices = @transform_0, window_bounds = array<i64: 80, 32>}, {pipeline_mode = #tpu.pipeline_mode<synchronous>, transform_indices = @transform_1, window_bounds = array<i64: 32, 32>}, {pipeline_mode = #tpu.pipeline_mode<synchronous>, transform_indices = @transform_2, window_bounds = array<i64: 1, 32>}, {pipeline_mode = #tpu.pipeline_mode<synchronous>, transform_indices = @transform_3, window_bounds = array<i64: 32, 32>}, {pipeline_mode = #tpu.pipeline_mode<synchronous>, transform_indices = @transform_4, window_bounds = array<i64: 1, 32>}, {pipeline_mode = #tpu.pipeline_mode<synchronous>, transform_indices = @transform_5, window_bounds = array<i64: 32, 128>}, {pipeline_mode = #tpu.pipeline_mode<synchronous>, transform_indices = @transform_6, window_bounds = array<i64: 1, 128>}, {transform_indices = @transform_7, window_bounds = array<i64: 80, 128>}]} {
    %c0 = arith.constant 0 : index
    %c0_0 = arith.constant 0 : index
    %0 = vector.load %arg1[%c0, %c0_0] : memref<80x32xbf16, #tpu.memory_space<vmem>>, vector<80x32xbf16>
    %c0_1 = arith.constant 0 : index
    %c0_2 = arith.constant 0 : index
    %1 = vector.load %arg2[%c0_1, %c0_2] : memref<32x32xbf16, #tpu.memory_space<vmem>>, vector<32x32xbf16>
    %cst = arith.constant dense<0.000000e+00> : vector<80x32xf32>
    %2 = tpu.matmul %0, %1, %cst {dimension_numbers = #tpu.dot_dimension_numbers<[1], [0], [0], [1], [0, 0, 1, 1], [], []>} : vector<80x32xbf16>, vector<32x32xbf16>, vector<80x32xf32> -> vector<80x32xf32>
    %c0_3 = arith.constant 0 : index
    %c0_4 = arith.constant 0 : index
    %3 = vector.load %arg3[%c0_3, %c0_4] : memref<1x32xf32, #tpu.memory_space<vmem>>, vector<1x32xf32>
    %4 = vector.broadcast %3 : vector<1x32xf32> to vector<80x32xf32>
    %5 = arith.addf %2, %4 : vector<80x32xf32>
    %cst_5 = arith.constant 0.000000e+00 : f32
    %6 = vector.broadcast %cst_5 : f32 to vector<80x32xf32>
    %7 = arith.maximumf %5, %6 : vector<80x32xf32>
    %8 = arith.truncf %7 : vector<80x32xf32> to vector<80x32xbf16>
    %c0_6 = arith.constant 0 : index
    %c0_7 = arith.constant 0 : index
    %9 = vector.load %arg4[%c0_6, %c0_7] : memref<32x32xbf16, #tpu.memory_space<vmem>>, vector<32x32xbf16>
    %cst_8 = arith.constant dense<0.000000e+00> : vector<80x32xf32>
    %10 = tpu.matmul %8, %9, %cst_8 {dimension_numbers = #tpu.dot_dimension_numbers<[1], [0], [0], [1], [0, 0, 1, 1], [], []>} : vector<80x32xbf16>, vector<32x32xbf16>, vector<80x32xf32> -> vector<80x32xf32>
    %c0_9 = arith.constant 0 : index
    %c0_10 = arith.constant 0 : index
    %11 = vector.load %arg5[%c0_9, %c0_10] : memref<1x32xf32, #tpu.memory_space<vmem>>, vector<1x32xf32>
    %12 = vector.broadcast %11 : vector<1x32xf32> to vector<80x32xf32>
    %13 = arith.addf %10, %12 : vector<80x32xf32>
    %cst_11 = arith.constant 0.000000e+00 : f32
    %14 = vector.broadcast %cst_11 : f32 to vector<80x32xf32>
    %15 = arith.maximumf %13, %14 : vector<80x32xf32>
    %16 = arith.truncf %15 : vector<80x32xf32> to vector<80x32xbf16>
    %c0_12 = arith.constant 0 : index
    %c0_13 = arith.constant 0 : index
    %17 = vector.load %arg6[%c0_12, %c0_13] : memref<32x128xbf16, #tpu.memory_space<vmem>>, vector<32x128xbf16>
    %cst_14 = arith.constant dense<0.000000e+00> : vector<80x128xf32>
    %18 = tpu.matmul %16, %17, %cst_14 {dimension_numbers = #tpu.dot_dimension_numbers<[1], [0], [0], [1], [0, 0, 1, 1], [], []>} : vector<80x32xbf16>, vector<32x128xbf16>, vector<80x128xf32> -> vector<80x128xf32>
    %c0_15 = arith.constant 0 : index
    %c0_16 = arith.constant 0 : index
    %19 = vector.load %arg7[%c0_15, %c0_16] : memref<1x128xf32, #tpu.memory_space<vmem>>, vector<1x128xf32>
    %20 = vector.broadcast %19 : vector<1x128xf32> to vector<80x128xf32>
    %21 = arith.addf %18, %20 : vector<80x128xf32>
    %c0_17 = arith.constant 0 : index
    %c0_18 = arith.constant 0 : index
    %22 = vector.load %arg8[%c0_17, %c0_18] : memref<80x128xf32, #tpu.memory_space<vmem>>, vector<80x128xf32>
    tpu.vector_store %arg8[%c0_17, %c0_18], %21 {strides = array<i32>} : memref<80x128xf32, #tpu.memory_space<vmem>>, vector<80x128xf32>,
    return
  }
  func.func @transform_0(%arg0: i32) -> (i32, i32) {
    %c0_i32 = arith.constant 0 : i32
    %c0_i32_0 = arith.constant 0 : i32
    return %arg0, %c0_i32 : i32, i32
  }
  func.func @transform_1(%arg0: i32) -> (i32, i32) {
    %c0_i32 = arith.constant 0 : i32
    %c0_i32_0 = arith.constant 0 : i32
    %c0_i32_1 = arith.constant 0 : i32
    return %c0_i32, %c0_i32_0 : i32, i32
  }
  func.func @transform_2(%arg0: i32) -> (i32, i32) {
    %c0_i32 = arith.constant 0 : i32
    %c0_i32_0 = arith.constant 0 : i32
    %c0_i32_1 = arith.constant 0 : i32
    return %c0_i32, %c0_i32_0 : i32, i32
  }
  func.func @transform_3(%arg0: i32) -> (i32, i32) {
    %c0_i32 = arith.constant 0 : i32
    %c0_i32_0 = arith.constant 0 : i32
    %c0_i32_1 = arith.constant 0 : i32
    return %c0_i32, %c0_i32_0 : i32, i32
  }
  func.func @transform_4(%arg0: i32) -> (i32, i32) {
    %c0_i32 = arith.constant 0 : i32
    %c0_i32_0 = arith.constant 0 : i32
    %c0_i32_1 = arith.constant 0 : i32
    return %c0_i32, %c0_i32_0 : i32, i32
  }
  func.func @transform_5(%arg0: i32) -> (i32, i32) {
    %c0_i32 = arith.constant 0 : i32
    %c0_i32_0 = arith.constant 0 : i32
    %c0_i32_1 = arith.constant 0 : i32
    return %c0_i32, %c0_i32_0 : i32, i32
  }
  func.func @transform_6(%arg0: i32) -> (i32, i32) {
    %c0_i32 = arith.constant 0 : i32
    %c0_i32_0 = arith.constant 0 : i32
    %c0_i32_1 = arith.constant 0 : i32
    return %c0_i32, %c0_i32_0 : i32, i32
  }
  func.func @transform_7(%arg0: i32) -> (i32, i32) {
    %c0_i32 = arith.constant 0 : i32
    %c0_i32_0 = arith.constant 0 : i32
    return %arg0, %c0_i32 : i32, i32
  }
}

</mosaic_0001>

<llo_original>
// kernel: tpu_custom_call.1
$region0: #{tpu_custom_call.1}
  #allocation0 [shape = 'u32[]', space=smem, size = 0x4, offset = 0x4, fixed_abs, tag = 'smem constant byte address 0x4 - core index']
  #allocation1 [shape = 'u32[144,128]{1,0:T(1,128)}', space=vmem, size = 0x12000, scoped, tag = 'internal scratch']
  %s0 = inlined_call_operand.vmem [shape: bf16[160,32], index: 0, kind: input, shape index: {}]
  %s1 = inlined_call_operand.vmem [shape: bf16[32,32], index: 1, kind: input, shape index: {}]
  %s2 = inlined_call_operand.vmem [shape: f32[1,32], index: 2, kind: input, shape index: {}]
  %s3 = inlined_call_operand.vmem [shape: bf16[32,32], index: 3, kind: input, shape index: {}]
  %s4 = inlined_call_operand.vmem [shape: f32[1,32], index: 4, kind: input, shape index: {}]
  %s5 = inlined_call_operand.vmem [shape: bf16[32,128], index: 5, kind: input, shape index: {}]
  %s6 = inlined_call_operand.vmem [shape: f32[1,128], index: 6, kind: input, shape index: {}]
  %s7 = inlined_call_operand.hbm [shape: f32[160,128], index: 7, kind: output, shape index: {}]
  %s8 = sld [smem:[#allocation0]]
  $region61: #{tpu_custom_call.1} parent=0
    _
  %s10 = ssub.s32 1, %s8
  %s11 = scalar_select 0, %s10, %s8
  $region1: #{tpu_custom_call.1} parent=0
    #allocation2 [shape = 'u8[81920]{0}', space=vmem, size = 0x14000, scoped, tag = 'output window, operand 0']
    #allocation3 [shape = 's32[2]{0}', space=sflag, size = 0x8, scoped, tag = 'scoped memory for tpu_custom_call.1']
    %12 = vsyncpa [#allocation3], 0
    %s13 = scalar_lea.sflag [#allocation3], 1
    %14 = vsyncpa %s13, 0
    loop: start=0, step=1, limit=4
    $region2: #{tpu_custom_call.1} parent=1 // loop_pre_header
      _
    $region3: #{tpu_custom_call.1} parent=1 // loop_header
      %s16 = sphi 0, %s20
      %p17 = scmp.ge.s32.totalorder %s16, 4
      %s26 = sphi 0, %s28
      %s29 = sphi 0, %s26
      %s30 = sphi 0, %s29
      %s46 = sphi 0, %s30
      %s50 = sphi 0, %s50
      %s52 = sphi 0, %s50
      %s53 = sphi 0, %s52
      %s67 = sphi 0, %s53
      %s71 = sphi 0, %s71
      %s73 = sphi 0, %s71
      %s74 = sphi 0, %s73
      %s88 = sphi 0, %s74
      %s92 = sphi 0, %s92
      %s94 = sphi 0, %s92
      %s95 = sphi 0, %s94
      %s109 = sphi 0, %s95
      %s113 = sphi 0, %s113
      %s115 = sphi 0, %s113
      %s116 = sphi 0, %s115
      %s130 = sphi 0, %s116
      %s134 = sphi 0, %s134
      %s136 = sphi 0, %s134
      %s137 = sphi 0, %s136
      %s151 = sphi 0, %s137
      %s155 = sphi 0, %s155
      %s157 = sphi 0, %s155
      %s158 = sphi 0, %s157
      %s172 = sphi 0, %s158
      %s178 = sphi 0, %s180
      %s181 = sphi 0, %s178
      %s182 = sphi 0, %s181
      %s198 = sphi 0, %s182
    $region4: #{tpu_custom_call.1} parent=1 // loop_header_branch
      %19 = sbr.rel (%p17) target = $region8
    $region5: #{tpu_custom_call.1} parent=1 // loop_body
      %s21 = ssub.s32 %s16, 1
      %s22 = ssub.s32 %s16, 2
      %s23 = sadd.s32 %s16, 1
      %s24 = ssub.s32 %s16, %s23
      %p25 = scmp.eq.s32.totalorder %s24, 0
      %s27 = sadd.s32 %s26, 1
      %s28 = scalar_select %p25, %s26, %s27
      %p31 = pneg %p25
      %p32 = scmp.eq.s32.totalorder %s16, 1
      %p33 = por %p31, %p32
      %p34 = scmp.ne.s32.totalorder %s26, %s29
      %p35 = scmp.eq.s32.totalorder %s16, 0
      %p36 = por %p34, %p35
      %p37 = scmp.ne.s32.totalorder %s26, %s29
      %p38 = scmp.eq.s32.totalorder %s21, 1
      %p39 = por %p37, %p38
      %p40 = scmp.ne.s32.totalorder %s29, %s30
      %p41 = scmp.eq.s32.totalorder %s21, 0
      %p42 = por %p40, %p41
      %p43 = scmp.ne.s32.totalorder %s29, %s30
      %p44 = scmp.eq.s32.totalorder %s22, 1
      %p45 = por %p43, %p44
      %p47 = scmp.ne.s32.totalorder %s30, %s46
      %p48 = scmp.eq.s32.totalorder %s22, 0
      %p49 = por %p47, %p48
      %s51 = sadd.s32 %s50, 1
      %p54 = scmp.eq.s32.totalorder %s16, 1
      %p55 = scmp.ne.s32.totalorder %s50, %s52
      %p56 = scmp.eq.s32.totalorder %s16, 0
      %p57 = por %p55, %p56
      %p58 = scmp.ne.s32.totalorder %s50, %s52
      %p59 = scmp.eq.s32.totalorder %s21, 1
      %p60 = por %p58, %p59
      %p61 = scmp.ne.s32.totalorder %s52, %s53
      %p62 = scmp.eq.s32.totalorder %s21, 0
      %p63 = por %p61, %p62
      %p64 = scmp.ne.s32.totalorder %s52, %s53
      %p65 = scmp.eq.s32.totalorder %s22, 1
      %p66 = por %p64, %p65
      %p68 = scmp.ne.s32.totalorder %s53, %s67
      %p69 = scmp.eq.s32.totalorder %s22, 0
      %p70 = por %p68, %p69
      %s72 = sadd.s32 %s71, 1
      %p75 = scmp.eq.s32.totalorder %s16, 1
      %p76 = scmp.ne.s32.totalorder %s71, %s73
      %p77 = scmp.eq.s32.totalorder %s16, 0
      %p78 = por %p76, %p77
      %p79 = scmp.ne.s32.totalorder %s71, %s73
      %p80 = scmp.eq.s32.totalorder %s21, 1
      %p81 = por %p79, %p80
      %p82 = scmp.ne.s32.totalorder %s73, %s74
      %p83 = scmp.eq.s32.totalorder %s21, 0
      %p84 = por %p82, %p83
      %p85 = scmp.ne.s32.totalorder %s73, %s74
      %p86 = scmp.eq.s32.totalorder %s22, 1
      %p87 = por %p85, %p86
      %p89 = scmp.ne.s32.totalorder %s74, %s88
      %p90 = scmp.eq.s32.totalorder %s22, 0
      %p91 = por %p89, %p90
      %s93 = sadd.s32 %s92, 1
      %p96 = scmp.eq.s32.totalorder %s16, 1
      %p97 = scmp.ne.s32.totalorder %s92, %s94
      %p98 = scmp.eq.s32.totalorder %s16, 0
      %p99 = por %p97, %p98
      %p100 = scmp.ne.s32.totalorder %s92, %s94
      %p101 = scmp.eq.s32.totalorder %s21, 1
      %p102 = por %p100, %p101
      %p103 = scmp.ne.s32.totalorder %s94, %s95
      %p104 = scmp.eq.s32.totalorder %s21, 0
      %p105 = por %p103, %p104
      %p106 = scmp.ne.s32.totalorder %s94, %s95
      %p107 = scmp.eq.s32.totalorder %s22, 1
      %p108 = por %p106, %p107
      %p110 = scmp.ne.s32.totalorder %s95, %s109
      %p111 = scmp.eq.s32.totalorder %s22, 0
      %p112 = por %p110, %p111
      %s114 = sadd.s32 %s113, 1
      %p117 = scmp.eq.s32.totalorder %s16, 1
      %p118 = scmp.ne.s32.totalorder %s113, %s115
      %p119 = scmp.eq.s32.totalorder %s16, 0
      %p120 = por %p118, %p119
      %p121 = scmp.ne.s32.totalorder %s113, %s115
      %p122 = scmp.eq.s32.totalorder %s21, 1
      %p123 = por %p121, %p122
      %p124 = scmp.ne.s32.totalorder %s115, %s116
      %p125 = scmp.eq.s32.totalorder %s21, 0
      %p126 = por %p124, %p125
      %p127 = scmp.ne.s32.totalorder %s115, %s116
      %p128 = scmp.eq.s32.totalorder %s22, 1
      %p129 = por %p127, %p128
      %p131 = scmp.ne.s32.totalorder %s116, %s130
      %p132 = scmp.eq.s32.totalorder %s22, 0
      %p133 = por %p131, %p132
      %s135 = sadd.s32 %s134, 1
      %p138 = scmp.eq.s32.totalorder %s16, 1
      %p139 = scmp.ne.s32.totalorder %s134, %s136
      %p140 = scmp.eq.s32.totalorder %s16, 0
      %p141 = por %p139, %p140
      %p142 = scmp.ne.s32.totalorder %s134, %s136
      %p143 = scmp.eq.s32.totalorder %s21, 1
      %p144 = por %p142, %p143
      %p145 = scmp.ne.s32.totalorder %s136, %s137
      %p146 = scmp.eq.s32.totalorder %s21, 0
      %p147 = por %p145, %p146
      %p148 = scmp.ne.s32.totalorder %s136, %s137
      %p149 = scmp.eq.s32.totalorder %s22, 1
      %p150 = por %p148, %p149
      %p152 = scmp.ne.s32.totalorder %s137, %s151
      %p153 = scmp.eq.s32.totalorder %s22, 0
      %p154 = por %p152, %p153
      %s156 = sadd.s32 %s155, 1
      %p159 = scmp.eq.s32.totalorder %s16, 1
      %p160 = scmp.ne.s32.totalorder %s155, %s157
      %p161 = scmp.eq.s32.totalorder %s16, 0
      %p162 = por %p160, %p161
      %p163 = scmp.ne.s32.totalorder %s155, %s157
      %p164 = scmp.eq.s32.totalorder %s21, 1
      %p165 = por %p163, %p164
      %p166 = scmp.ne.s32.totalorder %s157, %s158
      %p167 = scmp.eq.s32.totalorder %s21, 0
      %p168 = por %p166, %p167
      %p169 = scmp.ne.s32.totalorder %s157, %s158
      %p170 = scmp.eq.s32.totalorder %s22, 1
      %p171 = por %p169, %p170
      %p173 = scmp.ne.s32.totalorder %s158, %s172
      %p174 = scmp.eq.s32.totalorder %s22, 0
      %p175 = por %p173, %p174
      %s176 = ssub.s32 %s16, %s23
      %p177 = scmp.eq.s32.totalorder %s176, 0
      %s179 = sadd.s32 %s178, 1
      %s180 = scalar_select %p177, %s178, %s179
      %p183 = pneg %p177
      %p184 = scmp.eq.s32.totalorder %s16, 1
      %p185 = por %p183, %p184
      %p186 = scmp.ne.s32.totalorder %s178, %s181
      %p187 = scmp.eq.s32.totalorder %s16, 0
      %p188 = por %p186, %p187
      %p189 = scmp.ne.s32.totalorder %s178, %s181
      %p190 = scmp.eq.s32.totalorder %s21, 1
      %p191 = por %p189, %p190
      %p192 = scmp.ne.s32.totalorder %s181, %s182
      %p193 = scmp.eq.s32.totalorder %s21, 0
      %p194 = por %p192, %p193
      %p195 = scmp.ne.s32.totalorder %s181, %s182
      %p196 = scmp.eq.s32.totalorder %s22, 1
      %p197 = por %p195, %p196
      %p199 = scmp.ne.s32.totalorder %s182, %s198
      %p200 = scmp.eq.s32.totalorder %s22, 0
      %p201 = por %p199, %p200
      %p202 = scmp.le.s32.totalorder 1, %s16
      %p203 = scmp.lt.s32.totalorder %s16, 3
      %p204 = pnand %p202, %p203
      %p205 = pneg %p204
      // Predicated region
      $region9: #{tpu_custom_call.1} parent=5 // pred_check
        _
      $region10: #{tpu_custom_call.1} parent=5 // pred_check_branch
        %207 = sbr.rel (%p204) target = $region12
      $region11: #{tpu_custom_call.1} parent=5 // pred_region
        %s208 = ssub.s32 %s16, 1
        // Predicated region
        $region13: #{tpu_custom_call.1} parent=11 // pred_check
          %p209 = pneg %p63
        $region14: #{tpu_custom_call.1} parent=11 // pred_check_branch
          %211 = sbr.rel (%p209) target = $region16
        $region15: #{tpu_custom_call.1} parent=11 // pred_region
          _
        $region16: #{tpu_custom_call.1} parent=11 // pred_fallthru
          _
        // Predicated region
        $region17: #{tpu_custom_call.1} parent=11 // pred_check
          %p212 = pneg %p84
        $region18: #{tpu_custom_call.1} parent=11 // pred_check_branch
          %214 = sbr.rel (%p212) target = $region20
        $region19: #{tpu_custom_call.1} parent=11 // pred_region
          _
        $region20: #{tpu_custom_call.1} parent=11 // pred_fallthru
          _
        // Predicated region
        $region21: #{tpu_custom_call.1} parent=11 // pred_check
          %p215 = pneg %p105
        $region22: #{tpu_custom_call.1} parent=11 // pred_check_branch
          %217 = sbr.rel (%p215) target = $region24
        $region23: #{tpu_custom_call.1} parent=11 // pred_region
          _
        $region24: #{tpu_custom_call.1} parent=11 // pred_fallthru
          _
        // Predicated region
        $region25: #{tpu_custom_call.1} parent=11 // pred_check
          %p218 = pneg %p126
        $region26: #{tpu_custom_call.1} parent=11 // pred_check_branch
          %220 = sbr.rel (%p218) target = $region28
        $region27: #{tpu_custom_call.1} parent=11 // pred_region
          _
        $region28: #{tpu_custom_call.1} parent=11 // pred_fallthru
          _
        // Predicated region
        $region29: #{tpu_custom_call.1} parent=11 // pred_check
          %p221 = pneg %p147
        $region30: #{tpu_custom_call.1} parent=11 // pred_check_branch
          %223 = sbr.rel (%p221) target = $region32
        $region31: #{tpu_custom_call.1} parent=11 // pred_region
          _
        $region32: #{tpu_custom_call.1} parent=11 // pred_fallthru
          _
        // Predicated region
        $region33: #{tpu_custom_call.1} parent=11 // pred_check
          %p224 = pneg %p168
        $region34: #{tpu_custom_call.1} parent=11 // pred_check_branch
          %226 = sbr.rel (%p224) target = $region36
        $region35: #{tpu_custom_call.1} parent=11 // pred_region
          _
        $region36: #{tpu_custom_call.1} parent=11 // pred_fallthru
          _
      $region12: #{tpu_custom_call.1} parent=5 // pred_fallthru
        _
      %p227 = scmp.lt.s32.totalorder %s16, 2
      // Predicated region
      $region37: #{tpu_custom_call.1} parent=5 // pred_check
        %p228 = pneg %p227
      $region38: #{tpu_custom_call.1} parent=5 // pred_check_branch
        %230 = sbr.rel (%p228) target = $region40
      $region39: #{tpu_custom_call.1} parent=5 // pred_region
        // Predicated region
        $region41: #{tpu_custom_call.1} parent=39 // pred_check
          %p231 = pneg %p36
        $region42: #{tpu_custom_call.1} parent=39 // pred_check_branch
          %233 = sbr.rel (%p231) target = $region44
        $region43: #{tpu_custom_call.1} parent=39 // pred_region
          %s234 = smul.u32 10, %s16
          %p235 = scmp.lt.s32.totalorder %s234, 19
          %s236 = scalar_select %p235, %s234, 19
          %s237 = smul.addr %s236, 4
          %s238 = scalar_lea.vmem %s0, %s237
          %s239 = smul.u32 10, %s16
        $region44: #{tpu_custom_call.1} parent=39 // pred_fallthru
          _
      $region40: #{tpu_custom_call.1} parent=5 // pred_fallthru
        _
      %p240 = scmp.le.s32.totalorder 1, %s16
      %p241 = scmp.lt.s32.totalorder %s16, 3
      %p242 = pnand %p240, %p241
      %p243 = pneg %p242
      // Predicated region
      $region45: #{tpu_custom_call.1} parent=5 // pred_check
        _
      $region46: #{tpu_custom_call.1} parent=5 // pred_check_branch
        %245 = sbr.rel (%p242) target = $region48
      $region47: #{tpu_custom_call.1} parent=5 // pred_region
        %s246 = ssub.s32 %s16, 1
        %s247 = smul.u32 10, %s21
        %p248 = scmp.lt.s32.totalorder %s247, 19
        %s249 = scalar_select %p248, %s247, 19
        %s250 = smul.addr %s249, 4
        %s251 = scalar_lea.vmem %s0, %s250
        %p252 = pneg %p42
        %p253 = pneg %p39
        %p254 = pneg %p63
        %p255 = pneg %p60
        %p256 = pneg %p84
        %p257 = pneg %p81
        %p258 = pneg %p105
        %p259 = pneg %p102
        %p260 = pneg %p126
        %p261 = pneg %p123
        %p262 = pneg %p147
        %p263 = pneg %p144
        %p264 = pneg %p168
        %p265 = pneg %p165
        %p266 = pneg %p194
        %p267 = pneg %p191
        %s268 = sand.u32 %s181, 1
        %s269 = scalar_lea.sflag [#allocation3], %s268
        %s270 = sand.u32 %s181, 1
        %s271 = smul.addr %s270, 80
        %s272 = scalar_lea.vmem [#allocation2], %s271
        %s273 = smul.u32 10, %s21
        %p274 = scmp.lt.s32.totalorder %s273, 19
        %s275 = scalar_select %p274, %s273, 19
        %s276 = smul.addr %s275, 4
        %s277 = scalar_lea.vmem %s0, %s276
        %s278 = smul.u32 10, %s21
        %s279 = smul.u32 10, %s21
        %v281 = vld [vmem:[%s277] sm:$0xf]
        %v282 = vld [vmem:[%s277 + $0x4] sm:$0xf]
        %v283 = vld [vmem:[%s277 + $0x8] sm:$0xf]
        %v284 = vld [vmem:[%s277 + $0xc] sm:$0xf]
        %v285 = vld [vmem:[%s277 + $0x10] sm:$0xf]
        %v286 = vld [vmem:[%s277 + $0x14] sm:$0xf]
        %v287 = vld [vmem:[%s277 + $0x18] sm:$0xf]
        %v288 = vld [vmem:[%s277 + $0x1c] sm:$0xf]
        %v289 = vld [vmem:[%s277 + $0x20] sm:$0xf]
        %v290 = vld [vmem:[%s277 + $0x24] sm:$0xf]
        %v291 = vld [vmem:[%s1] sm:$0xf]
        %v292 = vld [vmem:[%s1 + $0x4] sm:$0xf]
        %v293 = vld [vmem:[%s1 + $0x8] sm:$0xf]
        %v294 = vld [vmem:[%s1 + $0xc] sm:$0xf]
        %v295 = vld [vmem:[%s2] sm:$0x1]
        %v297 = vlaneseq
        %v298 = vshrl.u32 %v297, 7
        %v299 = vsub.s32 0, %v298
        %v300 = vrot.slane %v295, %v299
        %v312 = vunpack.c.l.b16 %v281
        %v313 = vunpack.c.l.b16 %v282
        %v314 = vunpack.c.l.b16 %v283
        %v315 = vunpack.c.l.b16 %v284
        %v316 = vunpack.c.l.b16 %v285
        %v317 = vunpack.c.l.b16 %v286
        %v318 = vunpack.c.l.b16 %v287
        %v319 = vunpack.c.l.b16 %v288
        %v320 = vunpack.c.l.b16 %v289
        %v321 = vunpack.c.l.b16 %v290
        %v322 = vpack.c.b16 %v313, %v312
        %v323 = vpack.c.b16 %v315, %v314
        %v324 = vpack.c.b16 %v317, %v316
        %v325 = vpack.c.b16 %v319, %v318
        %v326 = vpack.c.b16 %v321, %v320
        %v331 = vunpack.c.l.b16 %v291
        %v332 = vunpack.c.l.b16 %v292
        %v333 = vunpack.c.l.b16 %v293
        %v334 = vunpack.c.l.b16 %v294
        %v335 = vpack.c.b16 %v332, %v331
        %v336 = vpack.c.b16 %v334, %v333
        %vm339 = vcmask 261120
        %v341 = vsel %vm339, %v322, 0
        %v344 = vsel %vm339, %v323, 0
        %v347 = vsel %vm339, %v324, 0
        %v350 = vsel %vm339, %v325, 0
        %v353 = vsel %vm339, %v326, 0
        %355 = vmatprep.subr.bf16.mxu0 0
        %356 = vmatpush1.bf16.msra.mxu0 0
        %357 = vmatprep.subr.bf16.mxu0 0
        %358 = vmatpush1.bf16.msra.mxu0 0
        %359 = vmatprep.subr.bf16.mxu0 0
        %360 = vmatpush1.bf16.msra.mxu0 0
        %361 = vmatprep.subr.bf16.mxu0 0
        %362 = vmatpush1.bf16.msra.mxu0 0
        %363 = vmatprep.subr.bf16.mxu0 0
        %364 = vmatpush1.bf16.msra.mxu0 0
        %365 = vmatprep.subr.bf16.mxu0 0
        %366 = vmatpush1.bf16.msra.mxu0 0
        %367 = vmatprep.subr.bf16.mxu0 0
        %368 = vmatpush1.bf16.msra.mxu0 %v336
        %369 = vmatprep.subr.bf16.mxu0 0
        %370 = vmatpush1.bf16.msra.mxu0 %v335
        %371 = vmatprep.subr.bf16.mxu0 0
        %372 = vmatpush2.bf16.msra.mxu0 0
        %373 = vmatprep.subr.bf16.mxu0 0
        %374 = vmatpush2.bf16.msra.mxu0 0
        %375 = vmatprep.subr.bf16.mxu0 0
        %376 = vmatpush2.bf16.msra.mxu0 0
        %377 = vmatprep.subr.bf16.mxu0 0
        %378 = vmatpush2.bf16.msra.mxu0 0
        %379 = vmatprep.subr.bf16.mxu0 0
        %380 = vmatpush2.bf16.msra.mxu0 0
        %381 = vmatprep.subr.bf16.mxu0 0
        %382 = vmatpush2.bf16.msra.mxu0 0
        %383 = vmatprep.subr.bf16.mxu0 0
        %384 = vmatpush2.bf16.msra.mxu0 0
        %385 = vmatprep.subr.bf16.mxu0 0
        %386 = vmatpush2.bf16.msra.mxu0 0
        %387 = vmatprep.mubr.bf16.mxu0 0
        %388 = vmatmul.mubr.bf16.gmra.mxu0 %v341
        %v389 = vpop.f32.mrf.mxu0
        %v390 = vadd.f32 %v300, %v389
        %v391 = vpop.f32.mrf.mxu0
        %v392 = vpop.f32.mrf.mxu0
        %v393 = vadd.f32 %v300, %v392
        %v394 = vpop.f32.mrf.mxu0
        %395 = vmatprep.mubr.bf16.mxu0 0
        %396 = vmatmul.mubr.bf16.gmra.mxu0 %v344
        %v397 = vpop.f32.mrf.mxu0
        %v398 = vadd.f32 %v300, %v397
        %v399 = vpop.f32.mrf.mxu0
        %v400 = vpop.f32.mrf.mxu0
        %v401 = vadd.f32 %v300, %v400
        %v402 = vpop.f32.mrf.mxu0
        %403 = vmatprep.mubr.bf16.mxu0 0
        %404 = vmatmul.mubr.bf16.gmra.mxu0 %v347
        %v405 = vpop.f32.mrf.mxu0
        %v406 = vadd.f32 %v300, %v405
        %v407 = vpop.f32.mrf.mxu0
        %v408 = vpop.f32.mrf.mxu0
        %v409 = vadd.f32 %v300, %v408
        %v410 = vpop.f32.mrf.mxu0
        %411 = vmatprep.mubr.bf16.mxu0 0
        %412 = vmatmul.mubr.bf16.gmra.mxu0 %v350
        %v413 = vpop.f32.mrf.mxu0
        %v414 = vadd.f32 %v300, %v413
        %v415 = vpop.f32.mrf.mxu0
        %v416 = vpop.f32.mrf.mxu0
        %v417 = vadd.f32 %v300, %v416
        %v418 = vpop.f32.mrf.mxu0
        %419 = vmatprep.mubr.bf16.mxu0 0
        %420 = vmatmul.mubr.bf16.gmra.mxu0 %v353
        %v421 = vpop.f32.mrf.mxu0
        %v422 = vadd.f32 %v300, %v421
        %v423 = vpop.f32.mrf.mxu0
        %v424 = vpop.f32.mrf.mxu0
        %v425 = vadd.f32 %v300, %v424
        %v426 = vpop.f32.mrf.mxu0
        %427 = vdwg.mxu0
        %v428 = vmax.f32 %v390, 0.0
        %v429 = vmax.f32 %v393, 0.0
        %v430 = vmax.f32 %v398, 0.0
        %v431 = vmax.f32 %v401, 0.0
        %v432 = vmax.f32 %v406, 0.0
        %v433 = vmax.f32 %v409, 0.0
        %v434 = vmax.f32 %v414, 0.0
        %v435 = vmax.f32 %v417, 0.0
        %v436 = vmax.f32 %v422, 0.0
        %v437 = vmax.f32 %v425, 0.0
        %v438 = vpack.c.bf16 %v429, %v428
        %v439 = vpack.c.bf16 %v431, %v430
        %v440 = vpack.c.bf16 %v433, %v432
        %v441 = vpack.c.bf16 %v435, %v434
        %v442 = vpack.c.bf16 %v437, %v436
        %v443 = vld [vmem:[%s3] sm:$0xf]
        %v444 = vld [vmem:[%s3 + $0x4] sm:$0xf]
        %v445 = vld [vmem:[%s3 + $0x8] sm:$0xf]
        %v446 = vld [vmem:[%s3 + $0xc] sm:$0xf]
        %v447 = vld [vmem:[%s4] sm:$0x1]
        %v449 = vlaneseq
        %v450 = vshrl.u32 %v449, 7
        %v451 = vsub.s32 0, %v450
        %v452 = vrot.slane %v447, %v451
        %v458 = vunpack.c.l.b16 %v443
        %v459 = vunpack.c.l.b16 %v444
        %v460 = vunpack.c.l.b16 %v445
        %v461 = vunpack.c.l.b16 %v446
        %v462 = vpack.c.b16 %v459, %v458
        %v463 = vpack.c.b16 %v461, %v460
        %v467 = vsel %vm339, %v438, 0
        %v470 = vsel %vm339, %v439, 0
        %v473 = vsel %vm339, %v440, 0
        %v476 = vsel %vm339, %v441, 0
        %v479 = vsel %vm339, %v442, 0
        %481 = vmatprep.subr.bf16.mxu0 0
        %482 = vmatpush1.bf16.msra.mxu0 0
        %483 = vmatprep.subr.bf16.mxu0 0
        %484 = vmatpush1.bf16.msra.mxu0 0
        %485 = vmatprep.subr.bf16.mxu0 0
        %486 = vmatpush1.bf16.msra.mxu0 0
        %487 = vmatprep.subr.bf16.mxu0 0
        %488 = vmatpush1.bf16.msra.mxu0 0
        %489 = vmatprep.subr.bf16.mxu0 0
        %490 = vmatpush1.bf16.msra.mxu0 0
        %491 = vmatprep.subr.bf16.mxu0 0
        %492 = vmatpush1.bf16.msra.mxu0 0
        %493 = vmatprep.subr.bf16.mxu0 0
        %494 = vmatpush1.bf16.msra.mxu0 %v463
        %495 = vmatprep.subr.bf16.mxu0 0
        %496 = vmatpush1.bf16.msra.mxu0 %v462
        %497 = vmatprep.subr.bf16.mxu0 0
        %498 = vmatpush2.bf16.msra.mxu0 0
        %499 = vmatprep.subr.bf16.mxu0 0
        %500 = vmatpush2.bf16.msra.mxu0 0
        %501 = vmatprep.subr.bf16.mxu0 0
        %502 = vmatpush2.bf16.msra.mxu0 0
        %503 = vmatprep.subr.bf16.mxu0 0
        %504 = vmatpush2.bf16.msra.mxu0 0
        %505 = vmatprep.subr.bf16.mxu0 0
        %506 = vmatpush2.bf16.msra.mxu0 0
        %507 = vmatprep.subr.bf16.mxu0 0
        %508 = vmatpush2.bf16.msra.mxu0 0
        %509 = vmatprep.subr.bf16.mxu0 0
        %510 = vmatpush2.bf16.msra.mxu0 0
        %511 = vmatprep.subr.bf16.mxu0 0
        %512 = vmatpush2.bf16.msra.mxu0 0
        %513 = vmatprep.mubr.bf16.mxu0 0
        %514 = vmatmul.mubr.bf16.gmra.mxu0 %v467
        %v515 = vpop.f32.mrf.mxu0
        %v516 = vadd.f32 %v452, %v515
        %v517 = vpop.f32.mrf.mxu0
        %v518 = vpop.f32.mrf.mxu0
        %v519 = vadd.f32 %v452, %v518
        %v520 = vpop.f32.mrf.mxu0
        %521 = vmatprep.mubr.bf16.mxu0 0
        %522 = vmatmul.mubr.bf16.gmra.mxu0 %v470
        %v523 = vpop.f32.mrf.mxu0
        %v524 = vadd.f32 %v452, %v523
        %v525 = vpop.f32.mrf.mxu0
        %v526 = vpop.f32.mrf.mxu0
        %v527 = vadd.f32 %v452, %v526
        %v528 = vpop.f32.mrf.mxu0
        %529 = vmatprep.mubr.bf16.mxu0 0
        %530 = vmatmul.mubr.bf16.gmra.mxu0 %v473
        %v531 = vpop.f32.mrf.mxu0
        %v532 = vadd.f32 %v452, %v531
        %v533 = vpop.f32.mrf.mxu0
        %v534 = vpop.f32.mrf.mxu0
        %v535 = vadd.f32 %v452, %v534
        %v536 = vpop.f32.mrf.mxu0
        %537 = vmatprep.mubr.bf16.mxu0 0
        %538 = vmatmul.mubr.bf16.gmra.mxu0 %v476
        %v539 = vpop.f32.mrf.mxu0
        %v540 = vadd.f32 %v452, %v539
        %v541 = vpop.f32.mrf.mxu0
        %v542 = vpop.f32.mrf.mxu0
        %v543 = vadd.f32 %v452, %v542
        %v544 = vpop.f32.mrf.mxu0
        %545 = vmatprep.mubr.bf16.mxu0 0
        %546 = vmatmul.mubr.bf16.gmra.mxu0 %v479
        %v547 = vpop.f32.mrf.mxu0
        %v548 = vadd.f32 %v452, %v547
        %v549 = vpop.f32.mrf.mxu0
        %v550 = vpop.f32.mrf.mxu0
        %v551 = vadd.f32 %v452, %v550
        %v552 = vpop.f32.mrf.mxu0
        %553 = vdwg.mxu0
        %v554 = vmax.f32 %v516, 0.0
        %v555 = vmax.f32 %v519, 0.0
        %v556 = vmax.f32 %v524, 0.0
        %v557 = vmax.f32 %v527, 0.0
        %v558 = vmax.f32 %v532, 0.0
        %v559 = vmax.f32 %v535, 0.0
        %v560 = vmax.f32 %v540, 0.0
        %v561 = vmax.f32 %v543, 0.0
        %v562 = vmax.f32 %v548, 0.0
        %v563 = vmax.f32 %v551, 0.0
        %v564 = vpack.c.bf16 %v555, %v554
        %v565 = vpack.c.bf16 %v557, %v556
        %v566 = vpack.c.bf16 %v559, %v558
        %v567 = vpack.c.bf16 %v561, %v560
        %v568 = vpack.c.bf16 %v563, %v562
        %v569 = vld [vmem:[%s5] sm:$0xf]
        %v570 = vld [vmem:[%s5 + $0x4] sm:$0xf]
        %v571 = vld [vmem:[%s5 + $0x8] sm:$0xf]
        %v572 = vld [vmem:[%s5 + $0xc] sm:$0xf]
        %v573 = vld [vmem:[%s6] sm:$0x1]
        %v575 = vlaneseq
        %v576 = vshrl.u32 %v575, 7
        %v577 = vsub.s32 0, %v576
        %v578 = vrot.slane %v573, %v577
        %v584 = vunpack.c.l.b16 %v569
        %v585 = vunpack.c.l.b16 %v570
        %v586 = vunpack.c.l.b16 %v571
        %v587 = vunpack.c.l.b16 %v572
        %v588 = vpack.c.b16 %v585, %v584
        %v589 = vpack.c.b16 %v587, %v586
        %v593 = vsel %vm339, %v564, 0
        %v596 = vsel %vm339, %v565, 0
        %v599 = vsel %vm339, %v566, 0
        %v602 = vsel %vm339, %v567, 0
        %v605 = vsel %vm339, %v568, 0
        %607 = vmatprep.subr.bf16.mxu0 0
        %608 = vmatpush1.bf16.msra.mxu0 0
        %609 = vmatprep.subr.bf16.mxu0 0
        %610 = vmatpush1.bf16.msra.mxu0 0
        %611 = vmatprep.subr.bf16.mxu0 0
        %612 = vmatpush1.bf16.msra.mxu0 0
        %613 = vmatprep.subr.bf16.mxu0 0
        %614 = vmatpush1.bf16.msra.mxu0 0
        %615 = vmatprep.subr.bf16.mxu0 0
        %616 = vmatpush1.bf16.msra.mxu0 0
        %617 = vmatprep.subr.bf16.mxu0 0
        %618 = vmatpush1.bf16.msra.mxu0 0
        %619 = vmatprep.subr.bf16.mxu0 0
        %620 = vmatpush1.bf16.msra.mxu0 %v589
        %621 = vmatprep.subr.bf16.mxu0 0
        %622 = vmatpush1.bf16.msra.mxu0 %v588
        %623 = vmatprep.subr.bf16.mxu0 0
        %624 = vmatpush2.bf16.msra.mxu0 0
        %625 = vmatprep.subr.bf16.mxu0 0
        %626 = vmatpush2.bf16.msra.mxu0 0
        %627 = vmatprep.subr.bf16.mxu0 0
        %628 = vmatpush2.bf16.msra.mxu0 0
        %629 = vmatprep.subr.bf16.mxu0 0
        %630 = vmatpush2.bf16.msra.mxu0 0
        %631 = vmatprep.subr.bf16.mxu0 0
        %632 = vmatpush2.bf16.msra.mxu0 0
        %633 = vmatprep.subr.bf16.mxu0 0
        %634 = vmatpush2.bf16.msra.mxu0 0
        %635 = vmatprep.subr.bf16.mxu0 0
        %636 = vmatpush2.bf16.msra.mxu0 0
        %637 = vmatprep.subr.bf16.mxu0 0
        %638 = vmatpush2.bf16.msra.mxu0 0
        %639 = vmatprep.mubr.bf16.mxu0 0
        %640 = vmatmul.mubr.bf16.gmra.mxu0 %v593
        %v641 = vpop.f32.mrf.mxu0
        %v642 = vadd.f32 %v578, %v641
        %v643 = vpop.f32.mrf.mxu0
        %v644 = vpop.f32.mrf.mxu0
        %v645 = vadd.f32 %v578, %v644
        %v646 = vpop.f32.mrf.mxu0
        %647 = vmatprep.mubr.bf16.mxu0 0
        %648 = vmatmul.mubr.bf16.gmra.mxu0 %v596
        %v649 = vpop.f32.mrf.mxu0
        %v650 = vadd.f32 %v578, %v649
        %v651 = vpop.f32.mrf.mxu0
        %v652 = vpop.f32.mrf.mxu0
        %v653 = vadd.f32 %v578, %v652
        %v654 = vpop.f32.mrf.mxu0
        %655 = vmatprep.mubr.bf16.mxu0 0
        %656 = vmatmul.mubr.bf16.gmra.mxu0 %v599
        %v657 = vpop.f32.mrf.mxu0
        %v658 = vadd.f32 %v578, %v657
        %v659 = vpop.f32.mrf.mxu0
        %v660 = vpop.f32.mrf.mxu0
        %v661 = vadd.f32 %v578, %v660
        %v662 = vpop.f32.mrf.mxu0
        %663 = vmatprep.mubr.bf16.mxu0 0
        %664 = vmatmul.mubr.bf16.gmra.mxu0 %v602
        %v665 = vpop.f32.mrf.mxu0
        %v666 = vadd.f32 %v578, %v665
        %v667 = vpop.f32.mrf.mxu0
        %v668 = vpop.f32.mrf.mxu0
        %v669 = vadd.f32 %v578, %v668
        %v670 = vpop.f32.mrf.mxu0
        %671 = vmatprep.mubr.bf16.mxu0 0
        %672 = vmatmul.mubr.bf16.gmra.mxu0 %v605
        %v673 = vpop.f32.mrf.mxu0
        %v674 = vadd.f32 %v578, %v673
        %v675 = vpop.f32.mrf.mxu0
        %v676 = vpop.f32.mrf.mxu0
        %v677 = vadd.f32 %v578, %v676
        %v678 = vpop.f32.mrf.mxu0
        %679 = vdwg.mxu0
        %680 = vst [vmem:[%s272] sm:$0xff] %v642
        %681 = vst [vmem:[%s272 + $0x8] sm:$0xff] %v645
        %682 = vst [vmem:[%s272 + $0x10] sm:$0xff] %v650
        %683 = vst [vmem:[%s272 + $0x18] sm:$0xff] %v653
        %684 = vst [vmem:[%s272 + $0x20] sm:$0xff] %v658
        %685 = vst [vmem:[%s272 + $0x28] sm:$0xff] %v661
        %686 = vst [vmem:[%s272 + $0x30] sm:$0xff] %v666
        %687 = vst [vmem:[%s272 + $0x38] sm:$0xff] %v669
        %688 = vst [vmem:[%s272 + $0x40] sm:$0xff] %v674
        %689 = vst [vmem:[%s272 + $0x48] sm:$0xff] %v677
        %s690 = sand.u32 %s181, 1
        %s691 = scalar_lea.sflag [#allocation3], %s690
        %s692 = sand.u32 %s181, 1
        %s693 = smul.addr %s692, 80
        %s694 = scalar_lea.vmem [#allocation2], %s693
        // Predicated region
        $region49: #{tpu_custom_call.1} parent=47 // pred_check
          %p695 = pneg %p191
        $region50: #{tpu_custom_call.1} parent=47 // pred_check_branch
          %697 = sbr.rel (%p695) target = $region52
        $region51: #{tpu_custom_call.1} parent=47 // pred_region
          %s698 = smul.u32 10, %s21
          %s700 = ssub.s32 1280, 1280
          %701 = vsyncadd %s691, %s700
          %s702 = smul.addr %s698, 128
          %s703 = scalar_lea.hbm %s7, %s702
          %s704 = sshll.u32 %s694, 4
          %s705 = int_to_ptr.vmem [resolvable:$true] %s704
          %710 = dma.vmem_to_hbm [thread:$0]  %s705, 1280, %s703, %s691, 128, 128, 8
        $region52: #{tpu_custom_call.1} parent=47 // pred_fallthru
          _
      $region48: #{tpu_custom_call.1} parent=5 // pred_fallthru
        _
      %p711 = scmp.le.s32.totalorder 2, %s16
      // Predicated region
      $region53: #{tpu_custom_call.1} parent=5 // pred_check
        %p712 = pneg %p711
      $region54: #{tpu_custom_call.1} parent=5 // pred_check_branch
        %714 = sbr.rel (%p712) target = $region56
      $region55: #{tpu_custom_call.1} parent=5 // pred_region
        %s715 = ssub.s32 %s16, 2
        // Predicated region
        $region57: #{tpu_custom_call.1} parent=55 // pred_check
          %p716 = pneg %p197
        $region58: #{tpu_custom_call.1} parent=55 // pred_check_branch
          %718 = sbr.rel (%p716) target = $region60
        $region59: #{tpu_custom_call.1} parent=55 // pred_region
          %s719 = sand.u32 %s182, 1
          %s720 = scalar_lea.sflag [#allocation3], %s719
          %s721 = sand.u32 %s182, 1
          %s722 = smul.addr %s721, 80
          %s723 = scalar_lea.vmem [#allocation2], %s722
          %724 = dma.done %s720, 1280
        $region60: #{tpu_custom_call.1} parent=55 // pred_fallthru
          _
      $region56: #{tpu_custom_call.1} parent=5 // pred_fallthru
        _
    $region6: #{tpu_custom_call.1} parent=1 // loop_footer
      %s20 = sadd.s32 1, %s16
    $region7: #{tpu_custom_call.1} parent=1 // loop_footer_branch
      %15 = sbr.rel target = $region3
    $region8: #{tpu_custom_call.1} parent=1 // loop_exit
      _
    %725 = vsyncpa [#allocation3], 1
    %s726 = scalar_lea.sflag [#allocation3], 1
    %727 = vsyncpa %s726, 1

</llo_original>
